<compile_context>
chip_gen: v7x
topology: tpu7x:2x2x1
jax: 0.10.0
libtpu: 0.0.40
codegen_flags: <defaults>
</compile_context>

<pallas_src>
import functools
import math

import jax
import jax.numpy as jnp
from jax.experimental import pallas as pl
from jax.experimental.pallas import tpu as pltpu


# ---------------------------------------------------------------------------
# Chip-aware budgets.
# ---------------------------------------------------------------------------
@functools.lru_cache(maxsize=1)
def _tpu_params():
    """Returns (vmem_budget_bytes, mxu_free_pad_boundary)."""
    vmem_bytes = 64 * 1024 * 1024          # conservative default (= v7x physical)
    mxu = 128                              # conservative default (v5e MXU is 128x128)
    try:
        info = pltpu.get_tpu_info()
        vmem_bytes = int(getattr(info, "vmem_capacity_bytes", vmem_bytes))
    except Exception:
        pass
    try:
        kind = jax.devices()[0].device_kind.lower()
        if ("v6" in kind) or ("v7" in kind):
            mxu = 256                      # 256x256 MXU: zero padding free up to 256
    except Exception:
        pass
    budget = int(vmem_bytes * 0.72)        # ~28% headroom for Mosaic internal scratch
    return budget, mxu


# ---------------------------------------------------------------------------
# Path A: fused block-diagonal matmul (nb*din and nb*dout <= MXU boundary).
# ---------------------------------------------------------------------------
def _make_fused_kernel(nb, din, dout, has_bias):
    def kernel(*refs):
        if has_bias:
            x_ref, w_ref, b_ref, o_ref, wbd_ref = refs
        else:
            x_ref, w_ref, o_ref, wbd_ref = refs
            b_ref = None

        # Build the block-diagonal (nb*din, nb*dout) weight ONCE (grid step 0)
        # from the packed (nb, din, dout) parameter; it stays VMEM-resident in
        # scratch for the remaining M tiles (no per-call HBM materialization).
        @pl.when(pl.program_id(0) == 0)
        def _build():
            wbd_ref[...] = jnp.zeros_like(wbd_ref)
            for b in range(nb):                       # static unroll; nb is small here
                wbd_ref[b * din:(b + 1) * din, b * dout:(b + 1) * dout] = w_ref[b]

        y = jnp.dot(x_ref[...], wbd_ref[...], preferred_element_type=jnp.float32)
        if has_bias:
            y = y + b_ref[...]
        o_ref[...] = y.astype(o_ref.dtype)

    return kernel


def _group_linear_fused(x, weight, bias_f32, out_dtype, budget):
    ts, nb, din = x.shape
    dout = weight.shape[-1]
    K, N = nb * din, nb * dout

    x2d = x.reshape(ts, K)                    # free, view-level reshape
    b2d = None if bias_f32 is None else bias_f32.reshape(1, N)
    has_bias = b2d is not None

    tm = 512 if ts > 512 else ts              # ragged tail handled by masked writes
    grid = (pl.cdiv(ts, tm),)

    in_specs = [pl.BlockSpec((tm, K), lambda i: (i, 0)),
                pl.BlockSpec((nb, din, dout), lambda i: (0, 0, 0))]   # resident
    operands = [x2d, weight]
    if has_bias:
        in_specs.append(pl.BlockSpec((1, N), lambda i: (0, 0)))
        operands.append(b2d)

    in_bytes = x.dtype.itemsize
    cost = pl.CostEstimate(
        flops=2 * ts * nb * din * dout,
        transcendentals=0,
        bytes_accessed=(x2d.size * in_bytes + weight.size * in_bytes
                        + (N * 4 if has_bias else 0)
                        + ts * N * jnp.dtype(out_dtype).itemsize))

    out2d = pl.pallas_call(
        _make_fused_kernel(nb, din, dout, has_bias),
        out_shape=jax.ShapeDtypeStruct((ts, N), out_dtype),
        grid_spec=pltpu.PrefetchScalarGridSpec(
            num_scalar_prefetch=0,
            grid=grid,
            in_specs=in_specs,
            out_specs=pl.BlockSpec((tm, N), lambda i: (i, 0)),
            scratch_shapes=[pltpu.VMEM((K, N), x.dtype)],
        ),
        compiler_params=pltpu.CompilerParams(
            # Sequential M axis: the block-diagonal scratch is built at step 0
            # and reused; a megacore split would leave core 1 uninitialized.
            dimension_semantics=("arbitrary",),
            vmem_limit_bytes=budget,
        ),
        cost_estimate=cost,
    )(*operands)
    return out2d.reshape(ts, nb, dout)


# ---------------------------------------------------------------------------
# Path B: lane-aligned generic path on free 2-D views (no transposes).
# ---------------------------------------------------------------------------
def _make_fullk_kernel(has_bias):
    def kernel(*refs):
        if has_bias:
            x_ref, w_ref, b_ref, o_ref = refs
        else:
            x_ref, w_ref, o_ref = refs
            b_ref = None
        y = jnp.dot(x_ref[...], w_ref[0], preferred_element_type=jnp.float32)
        if has_bias:
            y = y + b_ref[...]
        o_ref[...] = y.astype(o_ref.dtype)

    return kernel


def _make_ktiled_kernel(has_bias, use_scratch):
    def kernel(*refs):
        pos = 0
        x_ref = refs[pos]; pos += 1
        w_ref = refs[pos]; pos += 1
        if has_bias:
            b_ref = refs[pos]; pos += 1
        else:
            b_ref = None
        o_ref = refs[pos]; pos += 1
        # f32 output: accumulate directly into the output block (no scratch).
        acc_ref = refs[pos] if use_scratch else o_ref

        k = pl.program_id(3)

        @pl.when(k == 0)
        def _init():
            acc_ref[...] = jnp.zeros_like(acc_ref)

        acc_ref[...] += jnp.dot(x_ref[...], w_ref[0],
                                preferred_element_type=jnp.float32)

        @pl.when(k == pl.num_programs(3) - 1)
        def _finalize():
            y = acc_ref[...]
            if has_bias:
                y = y + b_ref[...]
            if use_scratch or has_bias:
                o_ref[...] = y.astype(o_ref.dtype)

    return kernel


def _group_linear_2d(x, weight, bias_f32, out_dtype, budget, force_ktiled=False):
    ts, nb, din = x.shape
    dout = weight.shape[-1]
    K, N = nb * din, nb * dout
    x2d = x.reshape(ts, K)                    # free view; no transpose / HBM copy
    has_bias = bias_f32 is not None

    in_bytes = x.dtype.itemsize
    out_bytes = jnp.dtype(out_dtype).itemsize
    tile_budget = int(budget * 0.8)

    def pick(dim, cands):
        for c in cands:
            if c <= dim and dim % c == 0:
                return c
        return dim

    tn = pick(dout, (512, 256, 128))          # dout % 128 == 0 guaranteed by caller
    nN = dout // tn
    tm_cands = (1024, 512, 256, 128, 64, 32, 16, 8)

    cost = pl.CostEstimate(
        flops=2 * ts * nb * din * dout,
        transcendentals=0,
        bytes_accessed=(x2d.size * in_bytes + weight.size * in_bytes
                        + (N * 4 if has_bias else 0) + ts * N * out_bytes))

    # ---- Plan 1: full-K, weight-resident (preferred) ------------------------
    def ws_fullk(tm):
        return (2 * (tm * din + din * tn) * in_bytes
                + 2 * tm * tn * out_bytes + 2 * tn * 4)

    tm_full = None
    for c in tm_cands:
        if c <= ts and ws_fullk(c) <= tile_budget:
            tm_full = c
            break
    if tm_full is None and ts < 8 and ws_fullk(ts) <= tile_budget:
        tm_full = ts

    if tm_full is not None and not force_ktiled:
        tm = tm_full
        nM = pl.cdiv(ts, tm)
        in_specs = [pl.BlockSpec((tm, din), lambda b, j, i: (i, b)),
                    # index constant across the innermost i sweep -> W[b] stays
                    # VMEM-resident; no per-M-tile weight re-streaming.
                    pl.BlockSpec((1, din, tn), lambda b, j, i: (b, 0, j))]
        operands = [x2d, weight]
        if has_bias:
            in_specs.append(pl.BlockSpec((1, tn), lambda b, j, i: (b, j)))
            operands.append(bias_f32)
        out2d = pl.pallas_call(
            _make_fullk_kernel(has_bias),
            out_shape=jax.ShapeDtypeStruct((ts, N), out_dtype),
            grid_spec=pltpu.PrefetchScalarGridSpec(
                num_scalar_prefetch=0,
                grid=(nb, nN, nM),
                in_specs=in_specs,
                out_specs=pl.BlockSpec((tm, tn), lambda b, j, i: (i, b * nN + j)),
            ),
            compiler_params=pltpu.CompilerParams(
                # All axes independent (no reduction axis): fully parallel so the
                # v7x megacore can shard whichever axis has extent >= 2.
                dimension_semantics=("parallel", "parallel", "parallel"),
                vmem_limit_bytes=budget,
            ),
            cost_estimate=cost,
        )(*operands)
        return out2d.reshape(ts, nb, dout)

    # ---- Plan 2: K-tiled (very large din) -----------------------------------
    tk_cands = (128,) if force_ktiled else (512, 256, 128)
    tk = pick(din, tk_cands)
    nKd = din // tk
    use_scratch = jnp.dtype(out_dtype) != jnp.dtype(jnp.float32)

    def ws_kt(tm):
        return (2 * (tm * tk + tk * tn) * in_bytes + 2 * tm * tn * out_bytes
                + (tm * tn * 4 if use_scratch else 0) + 2 * tn * 4)

    tm = next((c for c in tm_cands if c <= ts and ws_kt(c) <= tile_budget), None)
    if tm is None:
        tm = ts if ts < 8 else 8
    nM, nK = pl.cdiv(ts, tm), din // tk

    in_specs = [pl.BlockSpec((tm, tk), lambda b, i, j, k: (i, b * nKd + k)),
                # NOTE: W[b] is re-streamed once per M tile in this regime; bump
                # pipeline_mode=pl.Buffered(3) only if a profile shows exposed
                # weight DMA (extra buffers cost VMEM, scarce on v7x).
                pl.BlockSpec((1, tk, tn), lambda b, i, j, k: (b, k, j))]
    operands = [x2d, weight]
    if has_bias:
        in_specs.append(pl.BlockSpec((1, tn), lambda b, i, j, k: (b, j)))
        operands.append(bias_f32)
    scratch = [pltpu.VMEM((tm, tn), jnp.float32)] if use_scratch else []

    out2d = pl.pallas_call(
        _make_ktiled_kernel(has_bias, use_scratch),
        out_shape=jax.ShapeDtypeStruct((ts, N), out_dtype),
        grid_spec=pltpu.PrefetchScalarGridSpec(
            num_scalar_prefetch=0,
            grid=(nb, nM, nN, nK),
            in_specs=in_specs,
            out_specs=pl.BlockSpec((tm, tn), lambda b, i, j, k: (i, b * nN + j)),
            scratch_shapes=scratch,
        ),
        compiler_params=pltpu.CompilerParams(
            dimension_semantics=("parallel", "parallel", "parallel", "arbitrary"),
            vmem_limit_bytes=budget,
        ),
        cost_estimate=cost,
    )(*operands)
    return out2d.reshape(ts, nb, dout)


# ---------------------------------------------------------------------------
# Path C: unaligned fallback (per-block full tiles, block-major).
# ---------------------------------------------------------------------------
def _make_blockmajor_kernel(has_bias):
    def kernel(*refs):
        if has_bias:
            x_ref, w_ref, b_ref, o_ref = refs
        else:
            x_ref, w_ref, o_ref = refs
            b_ref = None
        y = jnp.dot(x_ref[0], w_ref[0], preferred_element_type=jnp.float32)
        if has_bias:
            y = y + b_ref[...]
        o_ref[0] = y.astype(o_ref.dtype)

    return kernel


def _group_linear_fallback(x, weight, bias_f32, out_dtype, budget):
    # TODO(synk): tile ts/din/dout here for very large *unaligned* shapes; this
    # fallback keeps full per-block operands in VMEM (fine for moderate sizes).
    ts, nb, din = x.shape
    dout = weight.shape[-1]
    x_bm = jnp.transpose(x, (1, 0, 2))
    has_bias = bias_f32 is not None

    in_specs = [pl.BlockSpec((1, ts, din), lambda b: (b, 0, 0)),
                pl.BlockSpec((1, din, dout), lambda b: (b, 0, 0))]
    operands = [x_bm, weight]
    if has_bias:
        in_specs.append(pl.BlockSpec((1, dout), lambda b: (b, 0)))
        operands.append(bias_f32)

    out_bm = pl.pallas_call(
        _make_blockmajor_kernel(has_bias),
        out_shape=jax.ShapeDtypeStruct((nb, ts, dout), out_dtype),
        grid_spec=pltpu.PrefetchScalarGridSpec(
            num_scalar_prefetch=0,
            grid=(nb,),
            in_specs=in_specs,
            out_specs=pl.BlockSpec((1, ts, dout), lambda b: (b, 0, 0)),
        ),
        compiler_params=pltpu.CompilerParams(
            dimension_semantics=("parallel",),
            vmem_limit_bytes=budget,
        ),
    )(*operands)
    return jnp.transpose(out_bm, (1, 0, 2))


# ---------------------------------------------------------------------------
# Public wrapper matching the PyTorch module's (ts, nb, d) convention.
# ---------------------------------------------------------------------------
def group_linear_layer(x, weight, bias=None, *, compute_dtype=None):
    """x: (ts, nb, din); weight: (nb, din, dout); bias: (nb, dout) or None.
    Returns (ts, nb, dout) in x.dtype, matching GroupLinearLayer.forward.

    compute_dtype: optional MXU input dtype (e.g. jnp.bfloat16) for v6e/v7x
    bf16 peak; accumulation stays f32 and the output keeps x.dtype.  Leave
    None for exact f32 parity with the PyTorch module."""
    ts, nb, din = x.shape
    assert weight.shape[0] == nb and weight.shape[1] == din
    dout = weight.shape[-1]
    out_dtype = x.dtype

    xc = x if compute_dtype is None else x.astype(compute_dtype)
    wc = weight if weight.dtype == xc.dtype else weight.astype(xc.dtype)
    bias_f32 = None if bias is None else bias.astype(jnp.float32)

    budget, mxu = _tpu_params()
    K, N = nb * din, nb * dout

    if K <= mxu and N <= mxu:
        # Small regime: one lane-dense block-diagonal matmul per M tile; the
        # zero padding is free on the MXU up to the generation's tile size.
        return _group_linear_fused(xc, wc, bias_f32, out_dtype, budget)
    if din % 128 == 0 and dout % 128 == 0:
        # Lane-aligned generic regime: free 2-D views, no transposes, resident W[b].
        return _group_linear_2d(xc, wc, bias_f32, out_dtype, budget)
    # Unaligned shapes: simple, correctness-first fallback.
    return _group_linear_fallback(xc, wc, bias_f32, out_dtype, budget)


if __name__ == "__main__":
    def _reference(x, w, b):
        y = jnp.einsum("tbi,bik->tbk", x, w)
        return y if b is None else y + b

    key = jax.random.PRNGKey(0)
    ks = jax.random.split(key, 9)

    # --- Path A: fused block-diagonal (nb*din = nb*dout = 128) ---
    ts, nb, din, dout = 8, 4, 32, 32
    a = 1.0 / math.sqrt(dout)
    x_s = jax.random.normal(ks[0], (ts, nb, din), dtype=jnp.float32)
    w_s = jax.random.uniform(ks[1], (nb, din, dout), minval=-a, maxval=a, dtype=jnp.float32)
    b_s = jax.random.uniform(ks[2], (nb, dout), minval=-a, maxval=a, dtype=jnp.float32)

    out = jax.block_until_ready(group_linear_layer(x_s, w_s, b_s))
    assert out.shape == (ts, nb, dout)
    assert jnp.allclose(out, _reference(x_s, w_s, b_s), atol=1e-5, rtol=1e-5)

    out = jax.block_until_ready(group_linear_layer(x_s, w_s, None))        # bias=False
    assert jnp.allclose(out, _reference(x_s, w_s, None), atol=1e-5, rtol=1e-5)

    # --- Path B: lane-aligned generic path (no transposes, resident W[b]) ---
    ts2, nb2, din2, dout2 = 16, 4, 256, 256
    a2 = 1.0 / math.sqrt(dout2)
    x_l = jax.random.normal(ks[3], (ts2, nb2, din2), dtype=jnp.float32)
    w_l = jax.random.uniform(ks[4], (nb2, din2, dout2), minval=-a2, maxval=a2, dtype=jnp.float32)
    b_l = jax.random.uniform(ks[5], (nb2, dout2), minval=-a2, maxval=a2, dtype=jnp.float32)
    ref_l = _reference(x_l, w_l, b_l)

    out = jax.block_until_ready(group_linear_layer(x_l, w_l, b_l))
    assert jnp.allclose(out, ref_l, atol=1e-4, rtol=1e-4)
    out = jax.block_until_ready(group_linear_layer(x_l, w_l, None))
    assert jnp.allclose(out, _reference(x_l, w_l, None), atol=1e-4, rtol=1e-4)

    # Opt-in bf16 compute (f32 accumulation, f32 output).
    out_bf = jax.block_until_ready(
        group_linear_layer(x_l, w_l, b_l, compute_dtype=jnp.bfloat16))
    assert out_bf.dtype == jnp.float32
    assert jnp.allclose(out_bf, ref_l, atol=5e-2, rtol=5e-2)

    # K-tiled variant of Path B (direct f32 accumulation into the output tile).
    budget, _ = _tpu_params()
    out_kt = jax.block_until_ready(
        _group_linear_2d(x_l, w_l, b_l, jnp.float32, budget, force_ktiled=True))
    assert jnp.allclose(out_kt, ref_l, atol=1e-4, rtol=1e-4)

    # --- Path C: unaligned fallback (din/dout not multiples of 128) ---
    ts3, nb3, din3, dout3 = 8, 3, 96, 80
    a3 = 1.0 / math.sqrt(dout3)
    x_u = jax.random.normal(ks[6], (ts3, nb3, din3), dtype=jnp.float32)
    w_u = jax.random.uniform(ks[7], (nb3, din3, dout3), minval=-a3, maxval=a3, dtype=jnp.float32)
    b_u = jax.random.uniform(ks[8], (nb3, dout3), minval=-a3, maxval=a3, dtype=jnp.float32)
    out = jax.block_until_ready(group_linear_layer(x_u, w_u, b_u))
    assert jnp.allclose(out, _reference(x_u, w_u, b_u), atol=1e-5, rtol=1e-5)

    print("KERNEL_OK")
</pallas_src>

<mosaic_0001>
module attributes {stable_mosaic.version = 11 : i64} {
  func.func @kernel(%arg0: i32, %arg1: memref<8x128xf32, #tpu.memory_space<vmem>>, %arg2: memref<4x32x32xf32, #tpu.memory_space<vmem>>, %arg3: memref<1x128xf32, #tpu.memory_space<vmem>>, %arg4: memref<8x128xf32, #tpu.memory_space<vmem>>, %arg5: memref<128x128xf32, #tpu.memory_space<vmem>>) attributes {dimension_semantics = [#tpu.dimension_semantics<arbitrary>], iteration_bounds = array<i64: 1>, scalar_prefetch = 0 : i64, scratch_operands = 1 : i64, tpu.core_type = #tpu.core_type<tc>, window_params = [{transform_indices = @transform_0, window_bounds = array<i64: 8, 128>}, {pipeline_mode = #tpu.pipeline_mode<synchronous>, transform_indices = @transform_1, window_bounds = array<i64: 4, 32, 32>}, {pipeline_mode = #tpu.pipeline_mode<synchronous>, transform_indices = @transform_2, window_bounds = array<i64: 1, 128>}, {transform_indices = @transform_3, window_bounds = array<i64: 8, 128>}]} {
    %c0_i32 = arith.constant 0 : i32
    %0 = arith.cmpi eq, %arg0, %c0_i32 : i32
    %1 = arith.extui %0 : i1 to i32
    %c0_i32_0 = arith.constant 0 : i32
    %2 = arith.cmpi ne, %1, %c0_i32_0 : i32
    scf.if %2 {
      %cst_8 = arith.constant 0.000000e+00 : f32
      %10 = vector.broadcast %cst_8 : f32 to vector<128x128xf32>
      %c0_9 = arith.constant 0 : index
      %c0_10 = arith.constant 0 : index
      %11 = vector.load %arg5[%c0_9, %c0_10] : memref<128x128xf32, #tpu.memory_space<vmem>>, vector<128x128xf32>
      tpu.vector_store %arg5[%c0_9, %c0_10], %10 {strides = array<i32>} : memref<128x128xf32, #tpu.memory_space<vmem>>, vector<128x128xf32>,
      %c0_11 = arith.constant 0 : index
      %c0_12 = arith.constant 0 : index
      %c0_13 = arith.constant 0 : index
      %12 = vector.load %arg2[%c0_11, %c0_12, %c0_13] : memref<4x32x32xf32, #tpu.memory_space<vmem>>, vector<1x32x32xf32>
      %13 = vector.shape_cast %12 : vector<1x32x32xf32> to vector<32x32xf32>
      %c0_14 = arith.constant 0 : index
      %c0_15 = arith.constant 0 : index
      %14 = vector.load %arg5[%c0_14, %c0_15] : memref<128x128xf32, #tpu.memory_space<vmem>>, vector<32x32xf32>
      tpu.vector_store %arg5[%c0_14, %c0_15], %13 {strides = array<i32>} : memref<128x128xf32, #tpu.memory_space<vmem>>, vector<32x32xf32>,
      %c1 = arith.constant 1 : index
      %c0_16 = arith.constant 0 : index
      %c0_17 = arith.constant 0 : index
      %15 = vector.load %arg2[%c1, %c0_16, %c0_17] : memref<4x32x32xf32, #tpu.memory_space<vmem>>, vector<1x32x32xf32>
      %16 = vector.shape_cast %15 : vector<1x32x32xf32> to vector<32x32xf32>
      %c32 = arith.constant 32 : index
      %c32_18 = arith.constant 32 : index
      %17 = vector.load %arg5[%c32, %c32_18] : memref<128x128xf32, #tpu.memory_space<vmem>>, vector<32x32xf32>
      tpu.vector_store %arg5[%c32, %c32_18], %16 {strides = array<i32>} : memref<128x128xf32, #tpu.memory_space<vmem>>, vector<32x32xf32>,
      %c2 = arith.constant 2 : index
      %c0_19 = arith.constant 0 : index
      %c0_20 = arith.constant 0 : index
      %18 = vector.load %arg2[%c2, %c0_19, %c0_20] : memref<4x32x32xf32, #tpu.memory_space<vmem>>, vector<1x32x32xf32>
      %19 = vector.shape_cast %18 : vector<1x32x32xf32> to vector<32x32xf32>
      %c64 = arith.constant 64 : index
      %c64_21 = arith.constant 64 : index
      %20 = vector.load %arg5[%c64, %c64_21] : memref<128x128xf32, #tpu.memory_space<vmem>>, vector<32x32xf32>
      tpu.vector_store %arg5[%c64, %c64_21], %19 {strides = array<i32>} : memref<128x128xf32, #tpu.memory_space<vmem>>, vector<32x32xf32>,
      %c3 = arith.constant 3 : index
      %c0_22 = arith.constant 0 : index
      %c0_23 = arith.constant 0 : index
      %21 = vector.load %arg2[%c3, %c0_22, %c0_23] : memref<4x32x32xf32, #tpu.memory_space<vmem>>, vector<1x32x32xf32>
      %22 = vector.shape_cast %21 : vector<1x32x32xf32> to vector<32x32xf32>
      %c96 = arith.constant 96 : index
      %c96_24 = arith.constant 96 : index
      %23 = vector.load %arg5[%c96, %c96_24] : memref<128x128xf32, #tpu.memory_space<vmem>>, vector<32x32xf32>
      tpu.vector_store %arg5[%c96, %c96_24], %22 {strides = array<i32>} : memref<128x128xf32, #tpu.memory_space<vmem>>, vector<32x32xf32>,
    } else {
    }
    %c0 = arith.constant 0 : index
    %c0_1 = arith.constant 0 : index
    %3 = vector.load %arg1[%c0, %c0_1] : memref<8x128xf32, #tpu.memory_space<vmem>>, vector<8x128xf32>
    %c0_2 = arith.constant 0 : index
    %c0_3 = arith.constant 0 : index
    %4 = vector.load %arg5[%c0_2, %c0_3] : memref<128x128xf32, #tpu.memory_space<vmem>>, vector<128x128xf32>
    %cst = arith.constant dense<0.000000e+00> : vector<8x128xf32>
    %5 = tpu.matmul %3, %4, %cst {dimension_numbers = #tpu.dot_dimension_numbers<[1], [0], [0], [1], [0, 0, 1, 1], [], []>} : vector<8x128xf32>, vector<128x128xf32>, vector<8x128xf32> -> vector<8x128xf32>
    %c0_4 = arith.constant 0 : index
    %c0_5 = arith.constant 0 : index
    %6 = vector.load %arg3[%c0_4, %c0_5] : memref<1x128xf32, #tpu.memory_space<vmem>>, vector<1x128xf32>
    %7 = vector.broadcast %6 : vector<1x128xf32> to vector<8x128xf32>
    %8 = arith.addf %5, %7 : vector<8x128xf32>
    %c0_6 = arith.constant 0 : index
    %c0_7 = arith.constant 0 : index
    %9 = vector.load %arg4[%c0_6, %c0_7] : memref<8x128xf32, #tpu.memory_space<vmem>>, vector<8x128xf32>
    tpu.vector_store %arg4[%c0_6, %c0_7], %8 {strides = array<i32>} : memref<8x128xf32, #tpu.memory_space<vmem>>, vector<8x128xf32>,
    return
  }
  func.func @transform_0(%arg0: i32) -> (i32, i32) {
    %c0_i32 = arith.constant 0 : i32
    %c0_i32_0 = arith.constant 0 : i32
    return %arg0, %c0_i32 : i32, i32
  }
  func.func @transform_1(%arg0: i32) -> (i32, i32, i32) {
    %c0_i32 = arith.constant 0 : i32
    %c0_i32_0 = arith.constant 0 : i32
    %c0_i32_1 = arith.constant 0 : i32
    %c0_i32_2 = arith.constant 0 : i32
    return %c0_i32, %c0_i32_0, %c0_i32_1 : i32, i32, i32
  }
  func.func @transform_2(%arg0: i32) -> (i32, i32) {
    %c0_i32 = arith.constant 0 : i32
    %c0_i32_0 = arith.constant 0 : i32
    %c0_i32_1 = arith.constant 0 : i32
    return %c0_i32, %c0_i32_0 : i32, i32
  }
  func.func @transform_3(%arg0: i32) -> (i32, i32) {
    %c0_i32 = arith.constant 0 : i32
    %c0_i32_0 = arith.constant 0 : i32
    return %arg0, %c0_i32 : i32, i32
  }
}

</mosaic_0001>

<llo_original>
// kernel: tpu_custom_call.1
$region0: #{tpu_custom_call.1}
  #allocation0 [shape = 'u32[]', space=smem, size = 0x4, offset = 0x4, fixed_abs, tag = 'smem constant byte address 0x4 - core index']
  #allocation1 [shape = 'u32[144,128]{1,0:T(1,128)}', space=vmem, size = 0x12000, scoped, tag = 'internal scratch']
  #allocation2 [shape = 'f32[128,128]{1,0:T(8,128)}', space=vmem, size = 0x10000, scoped, tag = 'scratch operand']
  %s0 = inlined_call_operand.hbm [shape: f32[8,128], index: 0, kind: input, shape index: {}]
  %s1 = inlined_call_operand.hbm [shape: f32[4,32,32], index: 1, kind: input, shape index: {}]
  %s2 = inlined_call_operand.vmem [shape: f32[1,128], index: 2, kind: input, shape index: {}]
  %s3 = inlined_call_operand.hbm [shape: f32[8,128], index: 3, kind: output, shape index: {}]
  %s4 = sld [smem:[#allocation0]]
  $region34: #{tpu_custom_call.1} parent=0
    _
  %s6 = ssub.s32 1, %s4
  %s7 = scalar_select 0, %s6, %s4
  $region1: #{tpu_custom_call.1} parent=0
    #allocation3 [shape = 'u8[4096]{0}', space=vmem, size = 0x1000, scoped, tag = 'input window, operand 0, single buffered']
    #allocation4 [shape = 's32[1]{0}', space=sflag, size = 0x4, scoped, tag = 'scoped memory for tpu_custom_call.1']
    #allocation5 [shape = 's32[1]{0}', space=sflag, size = 0x4, scoped, tag = 'scoped memory for tpu_custom_call.1']
    #allocation6 [shape = 'u8[65536]{0}', space=vmem, size = 0x10000, scoped, tag = 'input window, operand 1, single buffered']
    #allocation7 [shape = 's32[1]{0}', space=sflag, size = 0x4, scoped, tag = 'scoped memory for tpu_custom_call.1']
    #allocation8 [shape = 'u8[4096]{0}', space=vmem, size = 0x1000, scoped, tag = 'output window, operand 0, single buffered']
    %8 = vsyncpa [#allocation4], 0
    %9 = vsyncpa [#allocation7], 0
    %10 = vsyncpa [#allocation5], 0
    // Predicated region
    $region2: #{tpu_custom_call.1} parent=1 // pred_check
      _
    $region3: #{tpu_custom_call.1} parent=1 // pred_check_branch
      %12 = sbr.rel (0) target = $region5
    $region4: #{tpu_custom_call.1} parent=1 // pred_region
      %s14 = ssub.s32 128, 128
      %15 = vsyncadd [#allocation4], %s14
      %s17 = sshll.u32 [#allocation3], 4
      %s18 = int_to_ptr.vmem [resolvable:$true] %s17
      %20 = dma.hbm_to_vmem [thread:$0]  %s0, 128, %s18, [#allocation4]
    $region5: #{tpu_custom_call.1} parent=1 // pred_fallthru
      _
    // Predicated region
    $region6: #{tpu_custom_call.1} parent=1 // pred_check
      _
    $region7: #{tpu_custom_call.1} parent=1 // pred_check_branch
      %22 = sbr.rel (0) target = $region9
    $region8: #{tpu_custom_call.1} parent=1 // pred_region
      %s24 = ssub.s32 2048, 2048
      %25 = vsyncadd [#allocation7], %s24
      %s26 = sshll.u32 [#allocation6], 4
      %s27 = int_to_ptr.vmem [resolvable:$true] %s26
      %32 = dma.hbm_to_vmem [thread:$0]  %s1, 2048, %s27, [#allocation7], 128, 128, 8
    $region9: #{tpu_custom_call.1} parent=1 // pred_fallthru
      _
    // Predicated region
    $region10: #{tpu_custom_call.1} parent=1 // pred_check
      _
    $region11: #{tpu_custom_call.1} parent=1 // pred_check_branch
      %34 = sbr.rel (0) target = $region13
    $region12: #{tpu_custom_call.1} parent=1 // pred_region
      _
    $region13: #{tpu_custom_call.1} parent=1 // pred_fallthru
      _
    // Predicated region
    $region14: #{tpu_custom_call.1} parent=1 // pred_check
      _
    $region15: #{tpu_custom_call.1} parent=1 // pred_check_branch
      %36 = sbr.rel (0) target = $region17
    $region16: #{tpu_custom_call.1} parent=1 // pred_region
      %37 = dma.done [#allocation4], 128
    $region17: #{tpu_custom_call.1} parent=1 // pred_fallthru
      _
    // Predicated region
    $region18: #{tpu_custom_call.1} parent=1 // pred_check
      _
    $region19: #{tpu_custom_call.1} parent=1 // pred_check_branch
      %39 = sbr.rel (0) target = $region21
    $region20: #{tpu_custom_call.1} parent=1 // pred_region
      %40 = dma.done [#allocation7], 2048
    $region21: #{tpu_custom_call.1} parent=1 // pred_fallthru
      _
    %p41 = scmp.eq.s32.totalorder 0, 0
    // Predicated region
    $region22: #{tpu_custom_call.1} parent=1 // pred_check
      %p42 = pneg %p41
    $region23: #{tpu_custom_call.1} parent=1 // pred_check_branch
      %44 = sbr.rel (%p42) target = $region25
    $region24: #{tpu_custom_call.1} parent=1 // pred_region
      %45 = vst [vmem:[#allocation2] sm:$0xff] 0.0
      %46 = vst [vmem:[#allocation2 + $0x8] sm:$0xff] 0.0
      %47 = vst [vmem:[#allocation2 + $0x10] sm:$0xff] 0.0
      %48 = vst [vmem:[#allocation2 + $0x18] sm:$0xff] 0.0
      %49 = vst [vmem:[#allocation2 + $0x20] sm:$0xff] 0.0
      %50 = vst [vmem:[#allocation2 + $0x28] sm:$0xff] 0.0
      %51 = vst [vmem:[#allocation2 + $0x30] sm:$0xff] 0.0
      %52 = vst [vmem:[#allocation2 + $0x38] sm:$0xff] 0.0
      %53 = vst [vmem:[#allocation2 + $0x40] sm:$0xff] 0.0
      %54 = vst [vmem:[#allocation2 + $0x48] sm:$0xff] 0.0
      %55 = vst [vmem:[#allocation2 + $0x50] sm:$0xff] 0.0
      %56 = vst [vmem:[#allocation2 + $0x58] sm:$0xff] 0.0
      %57 = vst [vmem:[#allocation2 + $0x60] sm:$0xff] 0.0
      %58 = vst [vmem:[#allocation2 + $0x68] sm:$0xff] 0.0
      %59 = vst [vmem:[#allocation2 + $0x70] sm:$0xff] 0.0
      %60 = vst [vmem:[#allocation2 + $0x78] sm:$0xff] 0.0
      %v61 = vld [vmem:[#allocation6] sm:$0xff]
      %v62 = vld [vmem:[#allocation6 + $0x8] sm:$0xff]
      %v63 = vld [vmem:[#allocation6 + $0x10] sm:$0xff]
      %v64 = vld [vmem:[#allocation6 + $0x18] sm:$0xff]
      %vm65 = vcmask 261120
      %66 = vst.msk [vmem:[#allocation2] sm:$0xff] %vm65, %v61
      %67 = vst.msk [vmem:[#allocation2 + $0x8] sm:$0xff] %vm65, %v62
      %68 = vst.msk [vmem:[#allocation2 + $0x10] sm:$0xff] %vm65, %v63
      %69 = vst.msk [vmem:[#allocation2 + $0x18] sm:$0xff] %vm65, %v64
      %s70 = scalar_lea.vmem [#allocation6], 32
      %v71 = vld [vmem:[%s70] sm:$0xff]
      %v72 = vld [vmem:[%s70 + $0x8] sm:$0xff]
      %v73 = vld [vmem:[%s70 + $0x10] sm:$0xff]
      %v74 = vld [vmem:[%s70 + $0x18] sm:$0xff]
      %79 = vrot.lane.b32.xlu0 %v71, 32
      %v80 = vpop.permute.xlu0 %79
      %81 = vrot.lane.b32.xlu0 %v72, 32
      %v82 = vpop.permute.xlu0 %81
      %83 = vrot.lane.b32.xlu0 %v73, 32
      %v84 = vpop.permute.xlu0 %83
      %85 = vrot.lane.b32.xlu0 %v74, 32
      %v86 = vpop.permute.xlu0 %85
      %vm91 = vcmask 523520
      %92 = vst.msk [vmem:[#allocation2 + $0x20] sm:$0xff] %vm91, %v80
      %93 = vst.msk [vmem:[#allocation2 + $0x28] sm:$0xff] %vm91, %v82
      %94 = vst.msk [vmem:[#allocation2 + $0x30] sm:$0xff] %vm91, %v84
      %95 = vst.msk [vmem:[#allocation2 + $0x38] sm:$0xff] %vm91, %v86
      %s96 = scalar_lea.vmem [#allocation6], 64
      %v97 = vld [vmem:[%s96] sm:$0xff]
      %v98 = vld [vmem:[%s96 + $0x8] sm:$0xff]
      %v99 = vld [vmem:[%s96 + $0x10] sm:$0xff]
      %v100 = vld [vmem:[%s96 + $0x18] sm:$0xff]
      %105 = vrot.lane.b32.xlu0 %v97, 64
      %v106 = vpop.permute.xlu0 %105
      %107 = vrot.lane.b32.xlu0 %v98, 64
      %v108 = vpop.permute.xlu0 %107
      %109 = vrot.lane.b32.xlu0 %v99, 64
      %v110 = vpop.permute.xlu0 %109
      %111 = vrot.lane.b32.xlu0 %v100, 64
      %v112 = vpop.permute.xlu0 %111
      %vm117 = vcmask 785920
      %118 = vst.msk [vmem:[#allocation2 + $0x40] sm:$0xff] %vm117, %v106
      %119 = vst.msk [vmem:[#allocation2 + $0x48] sm:$0xff] %vm117, %v108
      %120 = vst.msk [vmem:[#allocation2 + $0x50] sm:$0xff] %vm117, %v110
      %121 = vst.msk [vmem:[#allocation2 + $0x58] sm:$0xff] %vm117, %v112
      %s122 = scalar_lea.vmem [#allocation6], 96
      %v123 = vld [vmem:[%s122] sm:$0xff]
      %v124 = vld [vmem:[%s122 + $0x8] sm:$0xff]
      %v125 = vld [vmem:[%s122 + $0x10] sm:$0xff]
      %v126 = vld [vmem:[%s122 + $0x18] sm:$0xff]
      %131 = vrot.lane.b32.xlu0 %v123, 96
      %v132 = vpop.permute.xlu0 %131
      %133 = vrot.lane.b32.xlu0 %v124, 96
      %v134 = vpop.permute.xlu0 %133
      %135 = vrot.lane.b32.xlu0 %v125, 96
      %v136 = vpop.permute.xlu0 %135
      %137 = vrot.lane.b32.xlu0 %v126, 96
      %v138 = vpop.permute.xlu0 %137
      %vm143 = vcmask 1048320
      %144 = vst.msk [vmem:[#allocation2 + $0x60] sm:$0xff] %vm143, %v132
      %145 = vst.msk [vmem:[#allocation2 + $0x68] sm:$0xff] %vm143, %v134
      %146 = vst.msk [vmem:[#allocation2 + $0x70] sm:$0xff] %vm143, %v136
      %147 = vst.msk [vmem:[#allocation2 + $0x78] sm:$0xff] %vm143, %v138
    $region25: #{tpu_custom_call.1} parent=1 // pred_fallthru
      _
    %v148 = vld [vmem:[#allocation3] sm:$0xff]
    %v149 = vld [vmem:[#allocation2] sm:$0xff]
    %v150 = vld [vmem:[#allocation2 + $0x8] sm:$0xff]
    %v151 = vld [vmem:[#allocation2 + $0x10] sm:$0xff]
    %v152 = vld [vmem:[#allocation2 + $0x18] sm:$0xff]
    %v153 = vld [vmem:[#allocation2 + $0x20] sm:$0xff]
    %v154 = vld [vmem:[#allocation2 + $0x28] sm:$0xff]
    %v155 = vld [vmem:[#allocation2 + $0x30] sm:$0xff]
    %v156 = vld [vmem:[#allocation2 + $0x38] sm:$0xff]
    %v157 = vld [vmem:[#allocation2 + $0x40] sm:$0xff]
    %v158 = vld [vmem:[#allocation2 + $0x48] sm:$0xff]
    %v159 = vld [vmem:[#allocation2 + $0x50] sm:$0xff]
    %v160 = vld [vmem:[#allocation2 + $0x58] sm:$0xff]
    %v161 = vld [vmem:[#allocation2 + $0x60] sm:$0xff]
    %v162 = vld [vmem:[#allocation2 + $0x68] sm:$0xff]
    %v163 = vld [vmem:[#allocation2 + $0x70] sm:$0xff]
    %v164 = vld [vmem:[#allocation2 + $0x78] sm:$0xff]
    %v165 = vld [vmem:[%s2] sm:$0x1]
    %v167 = vlaneseq
    %v168 = vshrl.u32 %v167, 7
    %v169 = vsub.s32 0, %v168
    %v170 = vrot.slane %v165, %v169
    %172 = vmatprep.subr.mxu0 0.0
    %173 = vmatpush1.msra.mxu0 %v149
    %174 = vmatprep.subr.mxu0 0.0
    %175 = vmatpush1.msra.mxu0 %v150
    %176 = vmatprep.subr.mxu0 0.0
    %177 = vmatpush1.msra.mxu0 %v151
    %178 = vmatprep.subr.mxu0 0.0
    %179 = vmatpush1.msra.mxu0 %v152
    %180 = vmatprep.subr.mxu0 0.0
    %181 = vmatpush1.msra.mxu0 %v153
    %182 = vmatprep.subr.mxu0 0.0
    %183 = vmatpush1.msra.mxu0 %v154
    %184 = vmatprep.subr.mxu0 0.0
    %185 = vmatpush1.msra.mxu0 %v155
    %186 = vmatprep.subr.mxu0 0.0
    %187 = vmatpush1.msra.mxu0 %v156
    %188 = vmatprep.subr.mxu0 0.0
    %189 = vmatpush1.msra.mxu0 %v157
    %190 = vmatprep.subr.mxu0 0.0
    %191 = vmatpush1.msra.mxu0 %v158
    %192 = vmatprep.subr.mxu0 0.0
    %193 = vmatpush1.msra.mxu0 %v159
    %194 = vmatprep.subr.mxu0 0.0
    %195 = vmatpush1.msra.mxu0 %v160
    %196 = vmatprep.subr.mxu0 0.0
    %197 = vmatpush1.msra.mxu0 %v161
    %198 = vmatprep.subr.mxu0 0.0
    %199 = vmatpush1.msra.mxu0 %v162
    %200 = vmatprep.subr.mxu0 0.0
    %201 = vmatpush1.msra.mxu0 %v163
    %202 = vmatprep.subr.mxu0 0.0
    %203 = vmatpush1.msra.mxu0 %v164
    %204 = vmatprep.subr.mxu0 0.0
    %205 = vmatpush1.msra.mxu0 0.0
    %206 = vmatprep.subr.mxu0 0.0
    %207 = vmatpush1.msra.mxu0 0.0
    %208 = vmatprep.subr.mxu0 0.0
    %209 = vmatpush1.msra.mxu0 0.0
    %210 = vmatprep.subr.mxu0 0.0
    %211 = vmatpush1.msra.mxu0 0.0
    %212 = vmatprep.subr.mxu0 0.0
    %213 = vmatpush1.msra.mxu0 0.0
    %214 = vmatprep.subr.mxu0 0.0
    %215 = vmatpush1.msra.mxu0 0.0
    %216 = vmatprep.subr.mxu0 0.0
    %217 = vmatpush1.msra.mxu0 0.0
    %218 = vmatprep.subr.mxu0 0.0
    %219 = vmatpush1.msra.mxu0 0.0
    %220 = vmatprep.subr.mxu0 0.0
    %221 = vmatpush1.msra.mxu0 0.0
    %222 = vmatprep.subr.mxu0 0.0
    %223 = vmatpush1.msra.mxu0 0.0
    %224 = vmatprep.subr.mxu0 0.0
    %225 = vmatpush1.msra.mxu0 0.0
    %226 = vmatprep.subr.mxu0 0.0
    %227 = vmatpush1.msra.mxu0 0.0
    %228 = vmatprep.subr.mxu0 0.0
    %229 = vmatpush1.msra.mxu0 0.0
    %230 = vmatprep.subr.mxu0 0.0
    %231 = vmatpush1.msra.mxu0 0.0
    %232 = vmatprep.subr.mxu0 0.0
    %233 = vmatpush1.msra.mxu0 0.0
    %234 = vmatprep.subr.mxu0 0.0
    %235 = vmatpush1.msra.mxu0 0.0
    %236 = vmatprep.mubr.f32.mxu0 0.0
    %237 = vmatmul.mubr.f32.gmra.mrb[0].mxu0 %v148
    %v238 = vpop.f32.mrb[0].mxu0
    %v239 = vadd.f32 %v170, %v238
    %v240 = vpop.f32.mrb[0].mxu0
    %241 = vdwg.mxu0
    %242 = vst [vmem:[#allocation8] sm:$0xff] %v239
    // Predicated region
    $region26: #{tpu_custom_call.1} parent=1 // pred_check
      _
    $region27: #{tpu_custom_call.1} parent=1 // pred_check_branch
      %244 = sbr.rel (0) target = $region29
    $region28: #{tpu_custom_call.1} parent=1 // pred_region
      %s246 = ssub.s32 128, 128
      %247 = vsyncadd [#allocation5], %s246
      %s249 = sshll.u32 [#allocation8], 4
      %s250 = int_to_ptr.vmem [resolvable:$true] %s249
      %252 = dma.vmem_to_hbm [thread:$0]  %s250, 128, %s3, [#allocation5]
    $region29: #{tpu_custom_call.1} parent=1 // pred_fallthru
      _
    // Predicated region
    $region30: #{tpu_custom_call.1} parent=1 // pred_check
      _
    $region31: #{tpu_custom_call.1} parent=1 // pred_check_branch
      %254 = sbr.rel (0) target = $region33
    $region32: #{tpu_custom_call.1} parent=1 // pred_region
      %255 = dma.done [#allocation5], 128
    $region33: #{tpu_custom_call.1} parent=1 // pred_fallthru
      _
    %256 = vsyncpa [#allocation4], 1
    %257 = vsyncpa [#allocation7], 1
    %258 = vsyncpa [#allocation5], 1

</llo_original>
